<compile_context>
chip_gen: v6e
topology: v6e:2x2x1
jax: 0.10.0
libtpu: 0.0.40
codegen_flags: <defaults>
</compile_context>

<pallas_src>
import functools

import jax
import jax.numpy as jnp
from jax import lax
from jax.experimental import pallas as pl
from jax.experimental.pallas import tpu as pltpu

# bf16 weights / matmul operands: halves HBM weight traffic and doubles MXU
# throughput on v6e/v7x (f32 accumulation everywhere). Set both to jnp.float32
# to restore exact f32 / torch parity.
MATMUL_COMPUTE_DTYPE = jnp.bfloat16
# Storage dtype of the precomputed gate pre-activations (x@W_ih + b); this is
# the dominant HBM stream of the recurrence.
GATES_DTYPE = jnp.bfloat16


def _round_up(x, m):
    return (x + m - 1) // m * m


def _vmem_capacity_bytes():
    """Physical VMEM per core (128 MiB v5e/v6e, 64 MiB v7x); safe fallback."""
    try:
        info = pltpu.get_tpu_info()
        cap = int(getattr(info, "vmem_capacity_bytes", 0) or 0)
        if cap > 0:
            return cap
        return 128 << 20
    except Exception:
        return 64 << 20          # conservative (v7x per-core)


def _vmem_budget_bytes():
    """Scoped-VMEM budget we size tiles against (and request via compiler params)."""
    return min(_vmem_capacity_bytes() // 2, 64 << 20)


def _pick_t_blk(S, b_blk, H, budget_bytes, cap=32):
    """Timesteps per recurrence grid step, sized from the VMEM budget."""
    gbytes = jnp.dtype(GATES_DTYPE).itemsize
    # double-buffered gates_in block + double-buffered output block, per step
    per_t = 2 * b_blk * 4 * H * gbytes + 2 * b_blk * H * 4
    t = int(max(1, min(cap, S, (budget_bytes // 2) // max(per_t, 1))))
    # Prefer a divisor of S near t so the sequence needs no time padding.
    for d in range(t, 0, -1):
        if S % d == 0 and 2 * d >= t:
            return d
    return t


# ---------------------------------------------------------------------------
# Tiled matmul + bias kernel:  (N, K) @ (K, M) + b   (x@W_ih and the fc head)
# ---------------------------------------------------------------------------
def _matmul_bias_kernel(x_ref, w_ref, b_ref, o_ref):
    x = x_ref[...].astype(w_ref.dtype)          # weights are pre-cast; cast acts only
    acc = jnp.dot(x, w_ref[...], preferred_element_type=jnp.float32)
    o_ref[...] = (acc + b_ref[...]).astype(o_ref.dtype)


def matmul_bias(x2d, w_t, b_row, out_dtype=jnp.float32):
    """x2d: (N, K) f32; w_t: (K, M) (pre-cast); b_row: (1, M) f32 -> (N, M)."""
    N, K = x2d.shape
    M = w_t.shape[-1]

    vmem_cap = _vmem_capacity_bytes()
    budget = _vmem_budget_bytes()
    wsize = jnp.dtype(w_t.dtype).itemsize
    osize = jnp.dtype(out_dtype).itemsize

    # Column tile.
    if M < 128:
        tn, Mp = M, M                           # block == full dim, no pad/slice
    else:
        Mp = _round_up(M, 128)
        tn = 512 if Mp % 512 == 0 else (256 if Mp % 256 == 0 else 128)

    # Row tile: as large as the VMEM budget allows, so the (K, M) weight matrix
    # is re-streamed from HBM as few times as possible (dominant cost of the
    # vocab head). Cap at 1024 on 64 MiB-VMEM parts (v7x).
    tm_cap = 1024 if vmem_cap <= (64 << 20) else 2048
    Nr = _round_up(N, 8)

    def fits(tm):
        need = 2 * (tm * K * 4 + K * tn * wsize + tn * 4 + tm * tn * osize)
        return need <= int(0.75 * budget)

    cands = {2048, 1024, 512, 256, 128, 64, 32, 16, 8, Nr}
    if Nr % 16 == 0:
        cands.add(Nr // 2)
    if Nr % 32 == 0:
        cands.add(Nr // 4)
    tm = 8
    for cand in sorted(cands, reverse=True):
        if 8 <= cand <= min(tm_cap, Nr) and fits(cand):
            tm = cand
            break

    Np = _round_up(N, tm)
    if Np != N:
        x2d = jnp.pad(x2d, ((0, Np - N), (0, 0)))
    if Mp != M:
        w_t = jnp.pad(w_t, ((0, 0), (0, Mp - M)))
        b_row = jnp.pad(b_row, ((0, 0), (0, Mp - M)))

    out = pl.pallas_call(
        _matmul_bias_kernel,
        out_shape=jax.ShapeDtypeStruct((Np, Mp), out_dtype),
        grid_spec=pltpu.PrefetchScalarGridSpec(
            num_scalar_prefetch=0,
            grid=(Np // tm, Mp // tn),           # cols inner: W streamed once per row tile
            in_specs=[
                pl.BlockSpec((tm, K), lambda i, j: (i, 0)),
                pl.BlockSpec((K, tn), lambda i, j: (0, j)),
                pl.BlockSpec((1, tn), lambda i, j: (0, j)),
            ],
            out_specs=pl.BlockSpec((tm, tn), lambda i, j: (i, j)),
        ),
        compiler_params=pltpu.CompilerParams(
            dimension_semantics=("parallel", "parallel"),
            vmem_limit_bytes=int(budget)),
    )(x2d, w_t, b_row)

    if (Np, Mp) != (N, M):
        out = out[:N, :M]
    return out


# ---------------------------------------------------------------------------
# LSTM recurrence kernel.  Input projection (x@W_ih + b) is precomputed as
# `gates_in` (GATES_DTYPE); per timestep we only do h@W_hh + gates_in[t] and
# elementwise gate math.  Grid = (batch_blocks, time_blocks); h/c carried in
# VMEM scratch per batch block; batch axis is megacore-parallel.
# ---------------------------------------------------------------------------
def _lstm_recurrence_kernel(gin_ref, whh_ref, h0_ref, c0_ref,
                            out_ref, hT_ref, cT_ref, h_sc, c_sc,
                            *, s_actual, s_padded, t_blk):
    t_idx = pl.program_id(1)
    n_t = pl.num_programs(1)
    H = h0_ref.shape[-1]

    @pl.when(t_idx == 0)
    def _():
        h_sc[...] = h0_ref[...]
        c_sc[...] = c0_ref[...]

    whh = whh_ref[...]                           # pre-cast to MATMUL_COMPUTE_DTYPE

    def step(t, carry):
        h, c = carry
        # (B_BLK, 4H) gate pre-activations: one small MXU call per step.
        gates = gin_ref[t].astype(jnp.float32) + jnp.dot(
            h.astype(whh.dtype), whh, preferred_element_type=jnp.float32)
        # Gate order i, f, g, o: sigmoid only on i/f/o, tanh only on g.
        sig_if = jax.nn.sigmoid(gates[:, : 2 * H])
        g_g = jnp.tanh(gates[:, 2 * H: 3 * H])
        o_g = jax.nn.sigmoid(gates[:, 3 * H:])
        i_g = sig_if[:, :H]
        f_g = sig_if[:, H:]
        c_new = f_g * c + i_g * g_g
        h_new = o_g * jnp.tanh(c_new)
        out_ref[t] = h_new
        if s_padded > s_actual:                  # static: only when S was padded
            valid = (t_idx * t_blk + t) < s_actual
            h_new = jnp.where(valid, h_new, h)
            c_new = jnp.where(valid, c_new, c)
        return h_new, c_new

    h, c = lax.fori_loop(0, t_blk, step, (h_sc[...], c_sc[...]), unroll=True)
    h_sc[...] = h
    c_sc[...] = c

    @pl.when(t_idx == n_t - 1)                   # per batch block
    def _():
        hT_ref[...] = h
        cT_ref[...] = c


def lstm_recurrence(gates_in, w_hh_t, h0, c0, *, t_blk, b_blk, s_actual):
    """gates_in: (Sp, Bp, 4H) GATES_DTYPE; w_hh_t: (H, 4H); h0, c0: (Bp, H)."""
    Sp, Bp, G4 = gates_in.shape
    H = h0.shape[-1]
    budget = _vmem_budget_bytes()

    kernel = functools.partial(_lstm_recurrence_kernel,
                               s_actual=s_actual, s_padded=Sp, t_blk=t_blk)

    out_shapes = (
        jax.ShapeDtypeStruct((Sp, Bp, H), jnp.float32),
        jax.ShapeDtypeStruct((Bp, H), jnp.float32),
        jax.ShapeDtypeStruct((Bp, H), jnp.float32),
    )

    return pl.pallas_call(
        kernel,
        out_shape=out_shapes,
        grid_spec=pltpu.PrefetchScalarGridSpec(
            num_scalar_prefetch=0,
            grid=(Bp // b_blk, Sp // t_blk),
            in_specs=[
                pl.BlockSpec((t_blk, b_blk, G4), lambda b, t: (t, b, 0)),
                pl.BlockSpec((H, G4), lambda b, t: (0, 0)),
                pl.BlockSpec((b_blk, H), lambda b, t: (b, 0)),
                pl.BlockSpec((b_blk, H), lambda b, t: (b, 0)),
            ],
            out_specs=(
                pl.BlockSpec((t_blk, b_blk, H), lambda b, t: (t, b, 0)),
                pl.BlockSpec((b_blk, H), lambda b, t: (b, 0)),
                pl.BlockSpec((b_blk, H), lambda b, t: (b, 0)),
            ),
            scratch_shapes=[
                pltpu.VMEM((b_blk, H), jnp.float32),
                pltpu.VMEM((b_blk, H), jnp.float32),
            ],
        ),
        compiler_params=pltpu.CompilerParams(
            dimension_semantics=("parallel", "arbitrary"),
            vmem_limit_bytes=int(budget)),
    )(gates_in, w_hh_t, h0, c0)


# ---------------------------------------------------------------------------
# PretrainEncoder parameters + forward
# ---------------------------------------------------------------------------
class PretrainEncoderParams:
    def __init__(self, key, vocab, emb_dim, hid_dim, n_layers):
        self.vocab = vocab
        self.emb_dim = emb_dim
        self.hid_dim = hid_dim
        self.n_layers = n_layers

        keys = jax.random.split(key, 2 + 4 * n_layers + 2)
        k = iter(keys)

        self.embedding = 0.1 * jax.random.normal(next(k), (vocab, emb_dim),
                                                 dtype=jnp.float32)
        self.lstm = []
        for layer in range(n_layers):
            in_dim = emb_dim if layer == 0 else hid_dim
            w_ih = 0.1 * jax.random.normal(next(k), (4 * hid_dim, in_dim),
                                           dtype=jnp.float32)
            w_hh = 0.1 * jax.random.normal(next(k), (4 * hid_dim, hid_dim),
                                           dtype=jnp.float32)
            b_ih = 0.1 * jax.random.normal(next(k), (4 * hid_dim,),
                                           dtype=jnp.float32)
            b_hh = 0.1 * jax.random.normal(next(k), (4 * hid_dim,),
                                           dtype=jnp.float32)
            # Pre-transpose AND pre-cast once (halves weight HBM/VMEM traffic).
            self.lstm.append((
                w_ih.T.astype(MATMUL_COMPUTE_DTYPE),
                w_hh.T.astype(MATMUL_COMPUTE_DTYPE),
                (b_ih + b_hh).reshape(1, 4 * hid_dim).astype(jnp.float32),
            ))
        fc_w = 0.1 * jax.random.normal(next(k), (vocab, hid_dim),
                                       dtype=jnp.float32)
        fc_b = 0.1 * jax.random.normal(next(k), (vocab,), dtype=jnp.float32)
        self.fc_w_t = fc_w.T.astype(MATMUL_COMPUTE_DTYPE)   # (H, vocab), once
        self.fc_b_row = fc_b.reshape(1, -1)


def pretrain_encoder_forward(params, tokens, hidden, cell):
    """tokens: (S, B) int32, hidden/cell: (n_layers, B, H).
    Returns (predictions (S, B, vocab), hidden, cell)."""
    S, B = tokens.shape
    H = params.hid_dim
    L = params.n_layers

    Bp = _round_up(B, 8)

    # Batch blocking for the recurrence: 2 blocks so v7x's two TensorCores each
    # take one (no-op on single-TC chips); respect the gates-dtype sublane quantum.
    g_sub = 16 if jnp.dtype(GATES_DTYPE).itemsize < 4 else 8
    if Bp >= 2 * g_sub and (Bp // 2) % g_sub == 0:
        b_blk = Bp // 2
    else:
        b_blk = Bp

    budget = _vmem_budget_bytes()
    t_blk = _pick_t_blk(S, b_blk, H, budget)
    Sp = _round_up(S, t_blk)

    # Pad tokens (cheap int32) instead of padding the (S, B, E) activations.
    if (Sp, Bp) != (S, B):
        tokens = jnp.pad(tokens, ((0, Sp - S), (0, Bp - B)))
    if Bp != B:
        hidden = jnp.pad(hidden, ((0, 0), (0, Bp - B), (0, 0)))
        cell = jnp.pad(cell, ((0, 0), (0, Bp - B), (0, 0)))

    # Embedding lookup (glue gather). Dropout = identity (eval mode).
    x = jnp.take(params.embedding, tokens, axis=0)           # (Sp, Bp, E) f32

    h_finals, c_finals = [], []
    for layer in range(L):
        w_ih_t, w_hh_t, b = params.lstm[layer]
        in_dim = x.shape[-1]
        # Hoisted input projection for ALL timesteps (one big tiled matmul);
        # bias folded in; result stored as GATES_DTYPE (bf16) for the recurrence.
        gin2d = matmul_bias(x.reshape(Sp * Bp, in_dim), w_ih_t, b,
                            out_dtype=GATES_DTYPE)
        gates_in = gin2d.reshape(Sp, Bp, 4 * H)
        # Serial recurrence (single small matmul + elementwise per step).
        x, h_f, c_f = lstm_recurrence(gates_in, w_hh_t,
                                      hidden[layer], cell[layer],
                                      t_blk=t_blk, b_blk=b_blk, s_actual=S)
        # torch nn.LSTM inter-layer dropout (identity in eval mode).
        h_finals.append(h_f)
        c_finals.append(c_f)

    hidden_out = jnp.stack(h_finals, axis=0)[:, :B]           # (L, B, H)
    cell_out = jnp.stack(c_finals, axis=0)[:, :B]             # (L, B, H)

    # fc(dropout(output)) ; dropout = identity. Tiled over rows and vocab.
    pred2d = matmul_bias(x.reshape(Sp * Bp, H), params.fc_w_t,
                         params.fc_b_row, out_dtype=jnp.float32)
    predictions = pred2d.reshape(Sp, Bp, params.vocab)[:S, :B]
    return predictions, hidden_out, cell_out


if __name__ == "__main__":
    # Small config consistent with the module's __init__.
    SRC_VOCAB = 32
    EMB_DIM = 16
    HID_DIM = 32
    N_LAYERS = 2
    SEQ = 8
    BATCH = 4

    key = jax.random.PRNGKey(0)
    pkey, tkey = jax.random.split(key)

    params = PretrainEncoderParams(pkey, SRC_VOCAB, EMB_DIM, HID_DIM, N_LAYERS)

    tokens = jax.random.randint(tkey, (SEQ, BATCH), 0, SRC_VOCAB,
                                dtype=jnp.int32)
    hidden0 = jnp.zeros((N_LAYERS, BATCH, HID_DIM), dtype=jnp.float32)
    cell0 = jnp.zeros((N_LAYERS, BATCH, HID_DIM), dtype=jnp.float32)

    preds, hidden, cell = pretrain_encoder_forward(params, tokens,
                                                   hidden0, cell0)
    jax.block_until_ready((preds, hidden, cell))

    assert preds.shape == (SEQ, BATCH, SRC_VOCAB)
    assert hidden.shape == (N_LAYERS, BATCH, HID_DIM)
    assert cell.shape == (N_LAYERS, BATCH, HID_DIM)
    assert bool(jnp.all(jnp.isfinite(preds)))
    assert bool(jnp.all(jnp.isfinite(hidden)))
    assert bool(jnp.all(jnp.isfinite(cell)))
    print("KERNEL_OK")
</pallas_src>

<mosaic_0001>
module attributes {stable_mosaic.version = 11 : i64} {
  func.func @_matmul_bias_kernel(%arg0: i32, %arg1: i32, %arg2: memref<64x16xf32, #tpu.memory_space<vmem>>, %arg3: memref<16x128xbf16, #tpu.memory_space<vmem>>, %arg4: memref<1x128xf32, #tpu.memory_space<vmem>>, %arg5: memref<64x128xbf16, #tpu.memory_space<vmem>>) attributes {dimension_semantics = [#tpu.dimension_semantics<parallel>, #tpu.dimension_semantics<parallel>], iteration_bounds = array<i64: 1, 1>, scalar_prefetch = 0 : i64, scratch_operands = 0 : i64, tpu.core_type = #tpu.core_type<tc>, window_params = [{transform_indices = @transform_0, window_bounds = array<i64: 64, 16>}, {transform_indices = @transform_1, window_bounds = array<i64: 16, 128>}, {transform_indices = @transform_2, window_bounds = array<i64: 1, 128>}, {transform_indices = @transform_3, window_bounds = array<i64: 64, 128>}]} {
    %c0 = arith.constant 0 : index
    %c0_0 = arith.constant 0 : index
    %0 = vector.load %arg2[%c0, %c0_0] : memref<64x16xf32, #tpu.memory_space<vmem>>, vector<64x16xf32>
    %1 = arith.truncf %0 : vector<64x16xf32> to vector<64x16xbf16>
    %c0_1 = arith.constant 0 : index
    %c0_2 = arith.constant 0 : index
    %2 = vector.load %arg3[%c0_1, %c0_2] : memref<16x128xbf16, #tpu.memory_space<vmem>>, vector<16x128xbf16>
    %cst = arith.constant dense<0.000000e+00> : vector<64x128xf32>
    %3 = tpu.matmul %1, %2, %cst {dimension_numbers = #tpu.dot_dimension_numbers<[1], [0], [0], [1], [0, 0, 1, 1], [], []>} : vector<64x16xbf16>, vector<16x128xbf16>, vector<64x128xf32> -> vector<64x128xf32>
    %c0_3 = arith.constant 0 : index
    %c0_4 = arith.constant 0 : index
    %4 = vector.load %arg4[%c0_3, %c0_4] : memref<1x128xf32, #tpu.memory_space<vmem>>, vector<1x128xf32>
    %5 = vector.broadcast %4 : vector<1x128xf32> to vector<64x128xf32>
    %6 = arith.addf %3, %5 : vector<64x128xf32>
    %7 = arith.truncf %6 : vector<64x128xf32> to vector<64x128xbf16>
    %c0_5 = arith.constant 0 : index
    %c0_6 = arith.constant 0 : index
    %8 = vector.load %arg5[%c0_5, %c0_6] : memref<64x128xbf16, #tpu.memory_space<vmem>>, vector<64x128xbf16>
    tpu.vector_store %arg5[%c0_5, %c0_6], %7 {strides = array<i32>} : memref<64x128xbf16, #tpu.memory_space<vmem>>, vector<64x128xbf16>,
    return
  }
  func.func @transform_0(%arg0: i32, %arg1: i32) -> (i32, i32) {
    %c0_i32 = arith.constant 0 : i32
    %c0_i32_0 = arith.constant 0 : i32
    return %arg0, %c0_i32 : i32, i32
  }
  func.func @transform_1(%arg0: i32, %arg1: i32) -> (i32, i32) {
    %c0_i32 = arith.constant 0 : i32
    %c0_i32_0 = arith.constant 0 : i32
    return %c0_i32, %arg1 : i32, i32
  }
  func.func @transform_2(%arg0: i32, %arg1: i32) -> (i32, i32) {
    %c0_i32 = arith.constant 0 : i32
    %c0_i32_0 = arith.constant 0 : i32
    return %c0_i32, %arg1 : i32, i32
  }
  func.func @transform_3(%arg0: i32, %arg1: i32) -> (i32, i32) {
    %c0_i32 = arith.constant 0 : i32
    return %arg0, %arg1 : i32, i32
  }
}

</mosaic_0001>

<llo_original>
// kernel: tpu_custom_call.1
$region0: #{tpu_custom_call.1}
  #allocation0 [shape = 'u32[]', space=smem, size = 0x4, offset = 0x4, fixed_abs, tag = 'smem constant byte address 0x4 - core index']
  #allocation1 [shape = 'u32[144,128]{1,0:T(1,128)}', space=vmem, size = 0x12000, scoped, tag = 'internal scratch']
  %s0 = inlined_call_operand.vmem [shape: f32[64,16], index: 0, kind: input, shape index: {}]
  %s1 = inlined_call_operand.vmem [shape: bf16[16,128], index: 1, kind: input, shape index: {}]
  %s2 = inlined_call_operand.vmem [shape: f32[1,128], index: 2, kind: input, shape index: {}]
  %s3 = inlined_call_operand.hbm [shape: bf16[64,128], index: 3, kind: output, shape index: {}]
  %s4 = sld [smem:[#allocation0]]
  $region22: #{tpu_custom_call.1} parent=0
    _
  %s6 = ssub.s32 1, %s4
  %s7 = scalar_select 0, %s6, %s4
  $region1: #{tpu_custom_call.1} parent=0
    #allocation2 [shape = 'u8[16384]{0}', space=vmem, size = 0x4000, scoped, tag = 'output window, operand 0, single buffered']
    #allocation3 [shape = 's32[1]{0}', space=sflag, size = 0x4, scoped, tag = 'scoped memory for tpu_custom_call.1']
    %8 = vsyncpa [#allocation3], 0
    // Predicated region
    $region2: #{tpu_custom_call.1} parent=1 // pred_check
      _
    $region3: #{tpu_custom_call.1} parent=1 // pred_check_branch
      %10 = sbr.rel (0) target = $region5
    $region4: #{tpu_custom_call.1} parent=1 // pred_region
      _
    $region5: #{tpu_custom_call.1} parent=1 // pred_fallthru
      _
    // Predicated region
    $region6: #{tpu_custom_call.1} parent=1 // pred_check
      _
    $region7: #{tpu_custom_call.1} parent=1 // pred_check_branch
      %12 = sbr.rel (0) target = $region9
    $region8: #{tpu_custom_call.1} parent=1 // pred_region
      _
    $region9: #{tpu_custom_call.1} parent=1 // pred_fallthru
      _
    // Predicated region
    $region10: #{tpu_custom_call.1} parent=1 // pred_check
      _
    $region11: #{tpu_custom_call.1} parent=1 // pred_check_branch
      %14 = sbr.rel (0) target = $region13
    $region12: #{tpu_custom_call.1} parent=1 // pred_region
      _
    $region13: #{tpu_custom_call.1} parent=1 // pred_fallthru
      _
    %v16 = vld [vmem:[%s0] sm:$0xff]
    %v17 = vld [vmem:[%s0 + $0x8] sm:$0xff]
    %v18 = vld [vmem:[%s0 + $0x10] sm:$0xff]
    %v19 = vld [vmem:[%s0 + $0x18] sm:$0xff]
    %v20 = vld [vmem:[%s0 + $0x20] sm:$0xff]
    %v21 = vld [vmem:[%s0 + $0x28] sm:$0xff]
    %v22 = vld [vmem:[%s0 + $0x30] sm:$0xff]
    %v23 = vld [vmem:[%s0 + $0x38] sm:$0xff]
    %v24 = vpack.c.bf16 %v17, %v16
    %v25 = vpack.c.bf16 %v19, %v18
    %v26 = vpack.c.bf16 %v21, %v20
    %v27 = vpack.c.bf16 %v23, %v22
    %v28 = vld [vmem:[%s1] sm:$0xf]
    %v29 = vld [vmem:[%s1 + $0x4] sm:$0xf]
    %v30 = vld [vmem:[%s2] sm:$0x1]
    %v32 = vlaneseq
    %v33 = vshrl.u32 %v32, 7
    %v34 = vsub.s32 0, %v33
    %v35 = vrot.slane %v30, %v34
    %v39 = vunpack.c.l.b16 %v28
    %v40 = vunpack.c.l.b16 %v29
    %v41 = vpack.c.b16 %v40, %v39
    %vm43 = vcmask 130048
    %v45 = vsel %vm43, %v24, 0
    %v48 = vsel %vm43, %v25, 0
    %v51 = vsel %vm43, %v26, 0
    %v54 = vsel %vm43, %v27, 0
    %56 = vmatprep.subr.bf16.mxu0 0
    %57 = vmatpush1.bf16.msra.mxu0 0
    %58 = vmatprep.subr.bf16.mxu0 0
    %59 = vmatpush1.bf16.msra.mxu0 0
    %60 = vmatprep.subr.bf16.mxu0 0
    %61 = vmatpush1.bf16.msra.mxu0 0
    %62 = vmatprep.subr.bf16.mxu0 0
    %63 = vmatpush1.bf16.msra.mxu0 0
    %64 = vmatprep.subr.bf16.mxu0 0
    %65 = vmatpush1.bf16.msra.mxu0 0
    %66 = vmatprep.subr.bf16.mxu0 0
    %67 = vmatpush1.bf16.msra.mxu0 0
    %68 = vmatprep.subr.bf16.mxu0 0
    %69 = vmatpush1.bf16.msra.mxu0 0
    %70 = vmatprep.subr.bf16.mxu0 0
    %71 = vmatpush1.bf16.msra.mxu0 %v41
    %72 = vmatprep.subr.bf16.mxu0 0
    %73 = vmatpush2.bf16.msra.mxu0 0
    %74 = vmatprep.subr.bf16.mxu0 0
    %75 = vmatpush2.bf16.msra.mxu0 0
    %76 = vmatprep.subr.bf16.mxu0 0
    %77 = vmatpush2.bf16.msra.mxu0 0
    %78 = vmatprep.subr.bf16.mxu0 0
    %79 = vmatpush2.bf16.msra.mxu0 0
    %80 = vmatprep.subr.bf16.mxu0 0
    %81 = vmatpush2.bf16.msra.mxu0 0
    %82 = vmatprep.subr.bf16.mxu0 0
    %83 = vmatpush2.bf16.msra.mxu0 0
    %84 = vmatprep.subr.bf16.mxu0 0
    %85 = vmatpush2.bf16.msra.mxu0 0
    %86 = vmatprep.subr.bf16.mxu0 0
    %87 = vmatpush2.bf16.msra.mxu0 0
    %88 = vmatprep.mubr.bf16.mxu0 0
    %89 = vmatmul.mubr.bf16.gmra.mxu0 %v45
    %v90 = vpop.f32.mrf.mxu0
    %v91 = vadd.f32 %v35, %v90
    %v92 = vpop.f32.mrf.mxu0
    %v93 = vpop.f32.mrf.mxu0
    %v94 = vadd.f32 %v35, %v93
    %v95 = vpop.f32.mrf.mxu0
    %96 = vmatprep.mubr.bf16.mxu0 0
    %97 = vmatmul.mubr.bf16.gmra.mxu0 %v48
    %v98 = vpop.f32.mrf.mxu0
    %v99 = vadd.f32 %v35, %v98
    %v100 = vpop.f32.mrf.mxu0
    %v101 = vpop.f32.mrf.mxu0
    %v102 = vadd.f32 %v35, %v101
    %v103 = vpop.f32.mrf.mxu0
    %104 = vmatprep.mubr.bf16.mxu0 0
    %105 = vmatmul.mubr.bf16.gmra.mxu0 %v51
    %v106 = vpop.f32.mrf.mxu0
    %v107 = vadd.f32 %v35, %v106
    %v108 = vpop.f32.mrf.mxu0
    %v109 = vpop.f32.mrf.mxu0
    %v110 = vadd.f32 %v35, %v109
    %v111 = vpop.f32.mrf.mxu0
    %112 = vmatprep.mubr.bf16.mxu0 0
    %113 = vmatmul.mubr.bf16.gmra.mxu0 %v54
    %v114 = vpop.f32.mrf.mxu0
    %v115 = vadd.f32 %v35, %v114
    %v116 = vpop.f32.mrf.mxu0
    %v117 = vpop.f32.mrf.mxu0
    %v118 = vadd.f32 %v35, %v117
    %v119 = vpop.f32.mrf.mxu0
    %120 = vdwg.mxu0
    %v121 = vpack.c.bf16 %v94, %v91
    %v122 = vpack.c.bf16 %v102, %v99
    %v123 = vpack.c.bf16 %v110, %v107
    %v124 = vpack.c.bf16 %v118, %v115
    %v129 = vunpack.c.l.b16 %v121
    %v130 = vunpack.c.h.b16 %v121
    %v131 = vunpack.c.l.b16 %v122
    %v132 = vunpack.c.h.b16 %v122
    %v133 = vunpack.c.l.b16 %v123
    %v134 = vunpack.c.h.b16 %v123
    %v135 = vunpack.c.l.b16 %v124
    %v136 = vunpack.c.h.b16 %v124
    %v137 = vpack.c.b16 %v129, %v129
    %v138 = vpack.c.b16 %v130, %v130
    %v139 = vpack.c.b16 %v131, %v131
    %v140 = vpack.c.b16 %v132, %v132
    %v141 = vpack.c.b16 %v133, %v133
    %v142 = vpack.c.b16 %v134, %v134
    %v143 = vpack.c.b16 %v135, %v135
    %v144 = vpack.c.b16 %v136, %v136
    %153 = vst [vmem:[#allocation2] sm:$0xf] %v137
    %154 = vst [vmem:[#allocation2 + $0x4] sm:$0xf] %v138
    %155 = vst [vmem:[#allocation2 + $0x8] sm:$0xf] %v139
    %156 = vst [vmem:[#allocation2 + $0xc] sm:$0xf] %v140
    %157 = vst [vmem:[#allocation2 + $0x10] sm:$0xf] %v141
    %158 = vst [vmem:[#allocation2 + $0x14] sm:$0xf] %v142
    %159 = vst [vmem:[#allocation2 + $0x18] sm:$0xf] %v143
    %160 = vst [vmem:[#allocation2 + $0x1c] sm:$0xf] %v144
    // Predicated region
    $region14: #{tpu_custom_call.1} parent=1 // pred_check
      _
    $region15: #{tpu_custom_call.1} parent=1 // pred_check_branch
      %162 = sbr.rel (0) target = $region17
    $region16: #{tpu_custom_call.1} parent=1 // pred_region
      %s164 = ssub.s32 512, 512
      %165 = vsyncadd [#allocation3], %s164
      %s166 = sshll.u32 [#allocation2], 4
      %s167 = int_to_ptr.vmem [resolvable:$true] %s166
      %172 = dma.vmem_to_hbm [thread:$0]  %s167, 512, %s3, [#allocation3], 64, 64, 4
    $region17: #{tpu_custom_call.1} parent=1 // pred_fallthru
      _
    // Predicated region
    $region18: #{tpu_custom_call.1} parent=1 // pred_check
      _
    $region19: #{tpu_custom_call.1} parent=1 // pred_check_branch
      %174 = sbr.rel (0) target = $region21
    $region20: #{tpu_custom_call.1} parent=1 // pred_region
      %175 = dma.done [#allocation3], 512
    $region21: #{tpu_custom_call.1} parent=1 // pred_fallthru
      _
    %176 = vsyncpa [#allocation3], 1

</llo_original>
